<compile_context>
chip_gen: v5e
topology: v5e:2x2
jax: 0.10.0
libtpu: 0.0.40
codegen_flags: <defaults>
</compile_context>

<pallas_src>
import jax
import jax.numpy as jnp
from jax.experimental import pallas as pl
from jax.experimental.pallas import tpu as pltpu


def _droppath_kernel(scale_ref, x_ref, o_ref):
    """scale_ref: VMEM (Bt,1,1) f32 ; x_ref/o_ref: VMEM (Bt, tile_r, 128)."""
    o_ref[...] = (x_ref[...].astype(jnp.float32) * scale_ref[...]).astype(o_ref.dtype)


def drop_path(x, drop_prob, seed, training=True, tile_bytes=2 << 20):
    """DropPath forward. x: (B, ...) any rank; returns same shape/dtype.

    tile_bytes: per-buffer VMEM tile budget. 2 MiB is safe on all generations;
    ~4-8 MiB recommended on v7x, 2-4 MiB on v6e, 1-2 MiB on v5e.
    """
    if drop_prob <= 0.0 or not training:
        return x

    keep_prob = 1.0 - float(drop_prob)
    batch = x.shape[0]
    feat = 1
    for d in x.shape[1:]:
        feat *= d

    # Per-batch keep decision + rescale, computed ONCE outside the kernel.
    key = jax.random.PRNGKey(seed)
    u = jax.random.uniform(key, (batch,), dtype=jnp.float32)
    scale = (u < keep_prob).astype(jnp.float32) * jnp.float32(1.0 / keep_prob)
    scale3 = scale.reshape(batch, 1, 1)

    itemsize = jnp.dtype(x.dtype).itemsize
    sub = 8 * max(1, 4 // max(1, itemsize))  # sublane packing: f32 8, bf16 16, int8 32
    rows = pl.cdiv(feat, 128)
    pad = rows * 128 - feat

    x2 = x.reshape(batch, feat)
    if pad:
        # TODO(synk): handling the ragged tail with a second tiny pallas_call
        # would avoid this extra HBM read+write; only hit when feat % 128 != 0.
        x2 = jnp.pad(x2, ((0, 0), (0, pad)))
    x3 = x2.reshape(batch, rows, 128)

    # Byte-budgeted tiling: one (or several) whole batch rows per step when
    # they fit the budget, otherwise split the row axis sublane-aligned.
    row_bytes = rows * 128 * itemsize
    budget_rows = max(sub, (tile_bytes // (128 * itemsize)) // sub * sub)
    if row_bytes <= tile_bytes:
        tile_r = rows                                   # full dim -> always legal
        bt = max(1, min(batch, tile_bytes // max(1, row_bytes)))
    else:
        tile_r = budget_rows                            # multiple of sub (>= 8)
        bt = 1

    # v7x has 2 TensorCores sharing HBM bandwidth: avoid a degenerate 1-step grid.
    grid = (pl.cdiv(batch, bt), pl.cdiv(rows, tile_r))
    if grid == (1, 1):
        if batch >= 2:
            bt = pl.cdiv(batch, 2)
        elif rows >= 2 * sub:
            tile_r = ((pl.cdiv(rows, 2) + sub - 1) // sub) * sub
        grid = (pl.cdiv(batch, bt), pl.cdiv(rows, tile_r))

    # Double-buffered in + out (+ tiny scale blocks); raise scoped VMEM only if needed.
    tile_buf_bytes = bt * tile_r * 128 * itemsize
    cp_kwargs = dict(dimension_semantics=("parallel", "parallel"))
    vmem_needed = 4 * tile_buf_bytes + (1 << 20)
    if vmem_needed > (30 << 20):
        cp_kwargs["vmem_limit_bytes"] = int(vmem_needed)

    out3 = pl.pallas_call(
        _droppath_kernel,
        out_shape=jax.ShapeDtypeStruct((batch, rows, 128), x.dtype),
        grid=grid,
        in_specs=[
            pl.BlockSpec((bt, 1, 1), lambda b, r: (b, 0, 0)),         # scale (B,1,1)
            pl.BlockSpec((bt, tile_r, 128), lambda b, r: (b, r, 0)),  # x tile
        ],
        out_specs=pl.BlockSpec((bt, tile_r, 128), lambda b, r: (b, r, 0)),
        compiler_params=pltpu.CompilerParams(**cp_kwargs),
    )(scale3, x3)

    out2 = out3.reshape(batch, rows * 128)
    if pad:
        out2 = out2[:, :feat]
    return out2.reshape(x.shape)


if __name__ == "__main__":
    key = jax.random.PRNGKey(0)
    # small NCHW-like input consistent with the CCT usage
    B, C, H, W = 2, 4, 16, 16
    x = jax.random.normal(key, (B, C, H, W), dtype=jnp.float32)

    drop_prob = 0.25
    keep_prob = 1.0 - drop_prob
    out = jax.block_until_ready(drop_path(x, drop_prob, seed=1234, training=True))

    ok = out.shape == x.shape and out.dtype == x.dtype
    # every batch row is either all zeros, or exactly x / keep_prob
    for b in range(B):
        ob = out[b]
        if bool(jnp.all(ob == 0)):
            continue
        if not bool(jnp.allclose(ob, x[b] / keep_prob, rtol=1e-6, atol=1e-6)):
            ok = False

    # ragged feature size (feat % 128 != 0) exercises the pad/slice fallback
    x_odd = jax.random.normal(jax.random.PRNGKey(1), (3, 5, 7, 11), dtype=jnp.float32)
    out_odd = jax.block_until_ready(drop_path(x_odd, 0.5, seed=7, training=True))
    for b in range(x_odd.shape[0]):
        ob = out_odd[b]
        if bool(jnp.all(ob == 0)):
            continue
        if not bool(jnp.allclose(ob, x_odd[b] / 0.5, rtol=1e-6, atol=1e-6)):
            ok = False

    # bf16: rescale happens in f32 and is cast once at the end
    x_bf = x.astype(jnp.bfloat16)
    out_bf = jax.block_until_ready(drop_path(x_bf, drop_prob, seed=1234, training=True))
    for b in range(B):
        ob = out_bf[b].astype(jnp.float32)
        if bool(jnp.all(ob == 0)):
            continue
        ref = x_bf[b].astype(jnp.float32) / keep_prob
        if not bool(jnp.allclose(ob, ref, rtol=2e-2, atol=1e-2)):
            ok = False

    # zero-prob and eval-mode paths are identity
    ok = ok and bool(jnp.array_equal(drop_path(x, 0.0, seed=1234, training=True), x))
    ok = ok and bool(jnp.array_equal(drop_path(x, drop_prob, seed=1234, training=False), x))

    print("KERNEL_OK" if ok else "KERNEL_MISMATCH")
</pallas_src>

<mosaic_0001>
module attributes {stable_mosaic.version = 11 : i64} {
  func.func @_droppath_kernel(%arg0: i32, %arg1: i32, %arg2: memref<1x1x1xf32, #tpu.memory_space<vmem>>, %arg3: memref<1x8x128xf32, #tpu.memory_space<vmem>>, %arg4: memref<1x8x128xf32, #tpu.memory_space<vmem>>) attributes {dimension_semantics = [#tpu.dimension_semantics<parallel>, #tpu.dimension_semantics<parallel>], iteration_bounds = array<i64: 2, 1>, scalar_prefetch = 0 : i64, scratch_operands = 0 : i64, tpu.core_type = #tpu.core_type<tc>, window_params = [{transform_indices = @transform_0, window_bounds = array<i64: 1, 1, 1>}, {transform_indices = @transform_1, window_bounds = array<i64: 1, 8, 128>}, {transform_indices = @transform_2, window_bounds = array<i64: 1, 8, 128>}]} {
    %c0 = arith.constant 0 : index
    %c0_0 = arith.constant 0 : index
    %c0_1 = arith.constant 0 : index
    %0 = vector.load %arg3[%c0, %c0_0, %c0_1] : memref<1x8x128xf32, #tpu.memory_space<vmem>>, vector<1x8x128xf32>
    %c0_2 = arith.constant 0 : index
    %c0_3 = arith.constant 0 : index
    %c0_4 = arith.constant 0 : index
    %1 = vector.load %arg2[%c0_2, %c0_3, %c0_4] : memref<1x1x1xf32, #tpu.memory_space<vmem>>, vector<1x1x1xf32>
    %2 = vector.broadcast %1 : vector<1x1x1xf32> to vector<1x8x128xf32>
    %3 = arith.mulf %0, %2 : vector<1x8x128xf32>
    %c0_5 = arith.constant 0 : index
    %c0_6 = arith.constant 0 : index
    %c0_7 = arith.constant 0 : index
    %4 = vector.load %arg4[%c0_5, %c0_6, %c0_7] : memref<1x8x128xf32, #tpu.memory_space<vmem>>, vector<1x8x128xf32>
    tpu.vector_store %arg4[%c0_5, %c0_6, %c0_7], %3 {strides = array<i32>} : memref<1x8x128xf32, #tpu.memory_space<vmem>>, vector<1x8x128xf32>,
    return
  }
  func.func @transform_0(%arg0: i32, %arg1: i32) -> (i32, i32, i32) {
    %c0_i32 = arith.constant 0 : i32
    %c0_i32_0 = arith.constant 0 : i32
    %c0_i32_1 = arith.constant 0 : i32
    return %arg0, %c0_i32, %c0_i32_0 : i32, i32, i32
  }
  func.func @transform_1(%arg0: i32, %arg1: i32) -> (i32, i32, i32) {
    %c0_i32 = arith.constant 0 : i32
    %c0_i32_0 = arith.constant 0 : i32
    return %arg0, %arg1, %c0_i32 : i32, i32, i32
  }
  func.func @transform_2(%arg0: i32, %arg1: i32) -> (i32, i32, i32) {
    %c0_i32 = arith.constant 0 : i32
    %c0_i32_0 = arith.constant 0 : i32
    return %arg0, %arg1, %c0_i32 : i32, i32, i32
  }
}

</mosaic_0001>

<llo_original>
// kernel: tpu_custom_call.1
$region0: #{tpu_custom_call.1}
  #allocation0 [shape = 'u32[]', space=smem, size = 0x4, offset = 0x4, fixed_abs, tag = 'smem constant byte address 0x4 - core index']
  #allocation1 [shape = 'u32[72,128]{1,0:T(1,128)}', space=vmem, size = 0x9000, scoped, tag = 'internal scratch']
  %s0 = inlined_call_operand.vmem [shape: f32[2,1,1], index: 0, kind: input, shape index: {}]
  %s1 = inlined_call_operand.hbm [shape: f32[2,8,128], index: 1, kind: input, shape index: {}]
  %s2 = inlined_call_operand.hbm [shape: f32[2,8,128], index: 2, kind: output, shape index: {}]
  %s3 = sld [smem:[#allocation0]]
  $region45: #{tpu_custom_call.1} parent=0
    _
  %s5 = ssub.s32 1, %s3
  %s6 = scalar_select 0, %s5, %s3
  $region1: #{tpu_custom_call.1} parent=0
    #allocation2 [shape = 'u8[8192]{0}', space=vmem, size = 0x2000, scoped, tag = 'input window, operand 1']
    #allocation3 [shape = 's32[2]{0}', space=sflag, size = 0x8, scoped, tag = 'scoped memory for tpu_custom_call.1']
    #allocation4 [shape = 's32[2]{0}', space=sflag, size = 0x8, scoped, tag = 'scoped memory for tpu_custom_call.1']
    #allocation5 [shape = 'u8[8192]{0}', space=vmem, size = 0x2000, scoped, tag = 'output window, operand 0']
    %7 = vsyncpa [#allocation3], 0
    %s8 = scalar_lea.sflag [#allocation3], 1
    %9 = vsyncpa %s8, 0
    %10 = vsyncpa [#allocation4], 0
    %s11 = scalar_lea.sflag [#allocation4], 1
    %12 = vsyncpa %s11, 0
    loop: start=0, step=1, limit=4
    $region2: #{tpu_custom_call.1} parent=1 // loop_pre_header
      _
    $region3: #{tpu_custom_call.1} parent=1 // loop_header
      %s14 = sphi 0, %s18
      %p15 = scmp.ge.s32.totalorder %s14, 4
      %s21 = sphi 0, %s33
      %s22 = sphi 0, %s29
      %s23 = sphi 0, %s21
      %s24 = sphi 0, %s22
      %s25 = sphi 0, %s23
      %s26 = sphi 0, %s24
      %s36 = sphi 0, %s38
      %s39 = sphi 0, %s36
      %s40 = sphi 0, %s39
      %s56 = sphi 0, %s40
      %s64 = sphi 0, %s66
      %s67 = sphi 0, %s64
      %s68 = sphi 0, %s67
      %s84 = sphi 0, %s68
      %s92 = sphi 0, %s94
      %s95 = sphi 0, %s92
      %s96 = sphi 0, %s95
      %s112 = sphi 0, %s96
    $region4: #{tpu_custom_call.1} parent=1 // loop_header_branch
      %17 = sbr.rel (%p15) target = $region8
    $region5: #{tpu_custom_call.1} parent=1 // loop_body
      %s19 = ssub.s32 %s14, 1
      %s20 = ssub.s32 %s14, 2
      %s27 = sadd.s32 1, %s22
      %p28 = scmp.ge.s32.totalorder %s27, 1
      %s29 = scalar_select %p28, 0, %s27
      %s30 = sadd.s32 1, %s21
      %s31 = scalar_select %p28, %s30, %s21
      %p32 = scmp.ge.s32.totalorder %s31, 2
      %s33 = scalar_select %p32, 0, %s31
      %s34 = ssub.s32 %s21, %s33
      %p35 = scmp.eq.s32.totalorder %s34, 0
      %s37 = sadd.s32 %s36, 1
      %s38 = scalar_select %p35, %s36, %s37
      %p41 = pneg %p35
      %p42 = scmp.eq.s32.totalorder %s14, 1
      %p43 = por %p41, %p42
      %p44 = scmp.ne.s32.totalorder %s36, %s39
      %p45 = scmp.eq.s32.totalorder %s14, 0
      %p46 = por %p44, %p45
      %p47 = scmp.ne.s32.totalorder %s36, %s39
      %p48 = scmp.eq.s32.totalorder %s19, 1
      %p49 = por %p47, %p48
      %p50 = scmp.ne.s32.totalorder %s39, %s40
      %p51 = scmp.eq.s32.totalorder %s19, 0
      %p52 = por %p50, %p51
      %p53 = scmp.ne.s32.totalorder %s39, %s40
      %p54 = scmp.eq.s32.totalorder %s20, 1
      %p55 = por %p53, %p54
      %p57 = scmp.ne.s32.totalorder %s40, %s56
      %p58 = scmp.eq.s32.totalorder %s20, 0
      %p59 = por %p57, %p58
      %s60 = ssub.s32 %s21, %s33
      %s61 = ssub.s32 %s22, %s29
      %s62 = sor.u32 %s60, %s61
      %p63 = scmp.eq.s32.totalorder %s62, 0
      %s65 = sadd.s32 %s64, 1
      %s66 = scalar_select %p63, %s64, %s65
      %p69 = pneg %p63
      %p70 = scmp.eq.s32.totalorder %s14, 1
      %p71 = por %p69, %p70
      %p72 = scmp.ne.s32.totalorder %s64, %s67
      %p73 = scmp.eq.s32.totalorder %s14, 0
      %p74 = por %p72, %p73
      %p75 = scmp.ne.s32.totalorder %s64, %s67
      %p76 = scmp.eq.s32.totalorder %s19, 1
      %p77 = por %p75, %p76
      %p78 = scmp.ne.s32.totalorder %s67, %s68
      %p79 = scmp.eq.s32.totalorder %s19, 0
      %p80 = por %p78, %p79
      %p81 = scmp.ne.s32.totalorder %s67, %s68
      %p82 = scmp.eq.s32.totalorder %s20, 1
      %p83 = por %p81, %p82
      %p85 = scmp.ne.s32.totalorder %s68, %s84
      %p86 = scmp.eq.s32.totalorder %s20, 0
      %p87 = por %p85, %p86
      %s88 = ssub.s32 %s21, %s33
      %s89 = ssub.s32 %s22, %s29
      %s90 = sor.u32 %s88, %s89
      %p91 = scmp.eq.s32.totalorder %s90, 0
      %s93 = sadd.s32 %s92, 1
      %s94 = scalar_select %p91, %s92, %s93
      %p97 = pneg %p91
      %p98 = scmp.eq.s32.totalorder %s14, 1
      %p99 = por %p97, %p98
      %p100 = scmp.ne.s32.totalorder %s92, %s95
      %p101 = scmp.eq.s32.totalorder %s14, 0
      %p102 = por %p100, %p101
      %p103 = scmp.ne.s32.totalorder %s92, %s95
      %p104 = scmp.eq.s32.totalorder %s19, 1
      %p105 = por %p103, %p104
      %p106 = scmp.ne.s32.totalorder %s95, %s96
      %p107 = scmp.eq.s32.totalorder %s19, 0
      %p108 = por %p106, %p107
      %p109 = scmp.ne.s32.totalorder %s95, %s96
      %p110 = scmp.eq.s32.totalorder %s20, 1
      %p111 = por %p109, %p110
      %p113 = scmp.ne.s32.totalorder %s96, %s112
      %p114 = scmp.eq.s32.totalorder %s20, 0
      %p115 = por %p113, %p114
      %p116 = scmp.le.s32.totalorder 1, %s14
      %p117 = scmp.lt.s32.totalorder %s14, 3
      %p118 = pnand %p116, %p117
      %p119 = pneg %p118
      // Predicated region
      $region9: #{tpu_custom_call.1} parent=5 // pred_check
        _
      $region10: #{tpu_custom_call.1} parent=5 // pred_check_branch
        %121 = sbr.rel (%p118) target = $region12
      $region11: #{tpu_custom_call.1} parent=5 // pred_region
        %s122 = ssub.s32 %s14, 1
      $region12: #{tpu_custom_call.1} parent=5 // pred_fallthru
        _
      %p123 = scmp.lt.s32.totalorder %s14, 2
      // Predicated region
      $region13: #{tpu_custom_call.1} parent=5 // pred_check
        %p124 = pneg %p123
      $region14: #{tpu_custom_call.1} parent=5 // pred_check_branch
        %126 = sbr.rel (%p124) target = $region16
      $region15: #{tpu_custom_call.1} parent=5 // pred_region
        // Predicated region
        $region17: #{tpu_custom_call.1} parent=15 // pred_check
          %p127 = pneg %p46
        $region18: #{tpu_custom_call.1} parent=15 // pred_check_branch
          %129 = sbr.rel (%p127) target = $region20
        $region19: #{tpu_custom_call.1} parent=15 // pred_region
          %p130 = scmp.lt.s32.totalorder %s21, 1
          %s131 = scalar_select %p130, %s21, 1
          %s132 = scalar_lea.vmem %s0, %s131
        $region20: #{tpu_custom_call.1} parent=15 // pred_fallthru
          _
        // Predicated region
        $region21: #{tpu_custom_call.1} parent=15 // pred_check
          %p133 = pneg %p74
        $region22: #{tpu_custom_call.1} parent=15 // pred_check_branch
          %135 = sbr.rel (%p133) target = $region24
        $region23: #{tpu_custom_call.1} parent=15 // pred_region
          %s136 = sand.u32 %s64, 1
          %s137 = scalar_lea.sflag [#allocation3], %s136
          %s138 = sand.u32 %s64, 1
          %s139 = smul.addr %s138, 8
          %s140 = scalar_lea.vmem [#allocation2], %s139
          %142 = vsyncadd %s137, 0
          %s143 = sadd.s32 %s22, %s21
          %s144 = smul.addr %s143, 8
          %s145 = scalar_lea.hbm %s1, %s144
          %s147 = sshll.u32 %s145, 4
          %s148 = int_to_ptr.hbm [resolvable:$true] %s147
          %s149 = sshll.u32 %s140, 4
          %s150 = int_to_ptr.vmem [resolvable:$true] %s149
          %152 = dma.hbm_to_vmem [thread:$0]  %s148, 128, %s150, %s137
        $region24: #{tpu_custom_call.1} parent=15 // pred_fallthru
          _
      $region16: #{tpu_custom_call.1} parent=5 // pred_fallthru
        _
      %p153 = scmp.le.s32.totalorder 1, %s14
      %p154 = scmp.lt.s32.totalorder %s14, 3
      %p155 = pnand %p153, %p154
      %p156 = pneg %p155
      // Predicated region
      $region25: #{tpu_custom_call.1} parent=5 // pred_check
        _
      $region26: #{tpu_custom_call.1} parent=5 // pred_check_branch
        %158 = sbr.rel (%p155) target = $region28
      $region27: #{tpu_custom_call.1} parent=5 // pred_region
        %s159 = ssub.s32 %s14, 1
        %s160 = sand.u32 %s67, 1
        %s161 = scalar_lea.sflag [#allocation3], %s160
        %s162 = sand.u32 %s67, 1
        %s163 = smul.addr %s162, 8
        %s164 = scalar_lea.vmem [#allocation2], %s163
        // Predicated region
        $region29: #{tpu_custom_call.1} parent=27 // pred_check
          %p165 = pneg %p80
        $region30: #{tpu_custom_call.1} parent=27 // pred_check_branch
          %167 = sbr.rel (%p165) target = $region32
        $region31: #{tpu_custom_call.1} parent=27 // pred_region
          %169 = dma.done %s161, 128
        $region32: #{tpu_custom_call.1} parent=27 // pred_fallthru
          _
        %p170 = scmp.lt.s32.totalorder %s23, 1
        %s171 = scalar_select %p170, %s23, 1
        %s172 = scalar_lea.vmem %s0, %s171
        %p173 = pneg %p52
        %p174 = pneg %p49
        %s175 = sand.u32 %s67, 1
        %s176 = scalar_lea.sflag [#allocation3], %s175
        %s177 = sand.u32 %s67, 1
        %s178 = smul.addr %s177, 8
        %s179 = scalar_lea.vmem [#allocation2], %s178
        %p180 = pneg %p80
        %p181 = pneg %p77
        %p182 = pneg %p108
        %p183 = pneg %p105
        %s184 = sand.u32 %s95, 1
        %s185 = scalar_lea.sflag [#allocation4], %s184
        %s186 = sand.u32 %s95, 1
        %s187 = smul.addr %s186, 8
        %s188 = scalar_lea.vmem [#allocation5], %s187
        %p189 = scmp.lt.s32.totalorder %s23, 1
        %s190 = scalar_select %p189, %s23, 1
        %s191 = scalar_lea.vmem %s0, %s190
        %v192 = vld [vmem:[%s164] sm:$0xff]
        %v193 = vld [vmem:[%s191] sm:$0x1]
        %v195 = vperm.slane %v193, 0
        %196 = vset.pattern.permute.xlu0 0
        %197 = vperm.xlu0 %196, %v195
        %v198 = vpop.permute.xlu0 %197
        %v200 = vmul.f32 %v192, %v198
        %201 = vst [vmem:[%s188] sm:$0xff] %v200
        %s202 = sand.u32 %s95, 1
        %s203 = scalar_lea.sflag [#allocation4], %s202
        %s204 = sand.u32 %s95, 1
        %s205 = smul.addr %s204, 8
        %s206 = scalar_lea.vmem [#allocation5], %s205
        // Predicated region
        $region33: #{tpu_custom_call.1} parent=27 // pred_check
          %p207 = pneg %p105
        $region34: #{tpu_custom_call.1} parent=27 // pred_check_branch
          %209 = sbr.rel (%p207) target = $region36
        $region35: #{tpu_custom_call.1} parent=27 // pred_region
          %211 = vsyncadd %s203, 0
          %s212 = sadd.s32 %s24, %s23
          %s213 = smul.addr %s212, 8
          %s214 = scalar_lea.hbm %s2, %s213
          %s216 = sshll.u32 %s206, 4
          %s217 = int_to_ptr.vmem [resolvable:$true] %s216
          %s218 = sshll.u32 %s214, 4
          %s219 = int_to_ptr.hbm [resolvable:$true] %s218
          %221 = dma.vmem_to_hbm [thread:$0]  %s217, 128, %s219, %s203
        $region36: #{tpu_custom_call.1} parent=27 // pred_fallthru
          _
      $region28: #{tpu_custom_call.1} parent=5 // pred_fallthru
        _
      %p222 = scmp.le.s32.totalorder 2, %s14
      // Predicated region
      $region37: #{tpu_custom_call.1} parent=5 // pred_check
        %p223 = pneg %p222
      $region38: #{tpu_custom_call.1} parent=5 // pred_check_branch
        %225 = sbr.rel (%p223) target = $region40
      $region39: #{tpu_custom_call.1} parent=5 // pred_region
        %s226 = ssub.s32 %s14, 2
        // Predicated region
        $region41: #{tpu_custom_call.1} parent=39 // pred_check
          %p227 = pneg %p111
        $region42: #{tpu_custom_call.1} parent=39 // pred_check_branch
          %229 = sbr.rel (%p227) target = $region44
        $region43: #{tpu_custom_call.1} parent=39 // pred_region
          %s230 = sand.u32 %s96, 1
          %s231 = scalar_lea.sflag [#allocation4], %s230
          %s232 = sand.u32 %s96, 1
          %s233 = smul.addr %s232, 8
          %s234 = scalar_lea.vmem [#allocation5], %s233
          %236 = dma.done %s231, 128
        $region44: #{tpu_custom_call.1} parent=39 // pred_fallthru
          _
      $region40: #{tpu_custom_call.1} parent=5 // pred_fallthru
        _
    $region6: #{tpu_custom_call.1} parent=1 // loop_footer
      %s18 = sadd.s32 1, %s14
    $region7: #{tpu_custom_call.1} parent=1 // loop_footer_branch
      %13 = sbr.rel target = $region3
    $region8: #{tpu_custom_call.1} parent=1 // loop_exit
      _
    %237 = vsyncpa [#allocation3], 1
    %s238 = scalar_lea.sflag [#allocation3], 1
    %239 = vsyncpa %s238, 1
    %240 = vsyncpa [#allocation4], 1
    %s241 = scalar_lea.sflag [#allocation4], 1
    %242 = vsyncpa %s241, 1

</llo_original>
